<compile_context>
chip_gen: v5e
topology: v5e:2x2
jax: 0.10.0
libtpu: 0.0.40
codegen_flags: <defaults>
</compile_context>

<pallas_src>
import jax
import jax.numpy as jnp
from jax.experimental import pallas as pl
from jax.experimental.pallas import tpu as pltpu


# VMEM sizing: keep estimated usage under 28 MiB and request a 32 MiB scoped
# limit -> safe on every generation (v7x: 64 MiB physical / 32 MiB default
# scoped; v5e default scoped is only 16 MiB so the explicit limit helps there).
_VMEM_BUDGET_BYTES = 28 * 1024 * 1024
_VMEM_LIMIT_BYTES = 32 * 1024 * 1024


def _round_up(x, m):
    return ((x + m - 1) // m) * m


def _largest_divisor_tile(total, unit, cap):
    """Largest multiple of `unit` that divides `total` and is <= cap (>= unit)."""
    assert total % unit == 0
    q = total // unit
    best = 1
    i = 1
    while i * i <= q:
        if q % i == 0:
            for d in (i, q // i):
                if d * unit <= cap and d > best:
                    best = d
        i += 1
    return best * unit


# ----------------------------------------------------------------------------
# Kernels
# ----------------------------------------------------------------------------
def pod_reduce_resident_kernel(x_ref, proj_ref, bias_ref, out_ref):
    """proj fully resident in VMEM: one MXU matmul + bias add per batch tile."""
    out_ref[...] = (
        jnp.dot(x_ref[...], proj_ref[...], preferred_element_type=jnp.float32)
        + bias_ref[...]
    ).astype(out_ref.dtype)


def pod_reduce_ktiled_kernel(x_ref, proj_ref, bias_ref, out_ref, acc_ref):
    """Fallback for huge n_dof*rank: K-reduction with bias folded into init."""
    k = pl.program_id(1)

    @pl.when(k == 0)
    def _():
        acc_ref[...] = jnp.broadcast_to(bias_ref[...], acc_ref.shape)

    acc_ref[...] += jnp.dot(
        x_ref[...], proj_ref[...], preferred_element_type=jnp.float32
    )

    @pl.when(k == pl.num_programs(1) - 1)
    def _():
        out_ref[...] = acc_ref[...].astype(out_ref.dtype)


# ----------------------------------------------------------------------------
# Wrapper
# ----------------------------------------------------------------------------
def pod_reduce(X, proj, bias, rank, *, tm_max=1024, tk_max=2048):
    """Pallas forward pass of PODBlock.

    X:    (B, n_dof)            input snapshots
    proj: (Np, Rp) f32 or bf16  pre-transposed, 1/std-folded, lane-padded basis
                                (Np = n_dof rounded up to 128, Rp = rank -> 128x)
    bias: (1, Rp) f32           folded -mean/std (zero in padded lanes)
    rank: true POD rank (output sliced back to this width)
    returns (B, rank) float32
    """
    B, n_dof = X.shape
    Np, Rp = proj.shape
    assert Np % 128 == 0 and Rp % 128 == 0 and Np >= n_dof

    in_dtype = proj.dtype
    itemsize = jnp.dtype(in_dtype).itemsize
    f32 = 4
    sublane = 8 if itemsize == 4 else 16          # bf16 packs 16 sublanes/vreg

    # ---- batch padding (only when unavoidable) ------------------------------
    Bp = _round_up(B, sublane)
    need_pad = (Bp != B) or (Np != n_dof)
    if need_pad:
        # Padded K columns are explicit zeros -> finite, safe for the matmul.
        Xp = jnp.zeros((Bp, Np), in_dtype).at[:B, :n_dof].set(X.astype(in_dtype))
    elif X.dtype != in_dtype:
        Xp = X.astype(in_dtype)
    else:
        Xp = X                                     # common aligned path: no copy

    cost = pl.CostEstimate(
        flops=2 * Bp * Np * Rp,
        transcendentals=0,
        bytes_accessed=(Bp * Np + Np * Rp) * itemsize + (Bp + 1) * Rp * f32,
    )
    compiler_params_parallel = pltpu.CompilerParams(
        dimension_semantics=("parallel",),
        vmem_limit_bytes=_VMEM_LIMIT_BYTES,
    )

    # ---- resident fast path: proj held fully in VMEM, no K grid axis --------
    proj_bytes = 2 * Np * Rp * itemsize            # conservative (double-buffer)
    bias_bytes = 2 * Rp * f32
    avail = _VMEM_BUDGET_BYTES - proj_bytes - bias_bytes
    denom = 2 * Np * itemsize + 2 * Rp * f32       # X tile (x2) + out tile (x2)
    tm_cap_resident = avail // denom if avail > 0 else 0

    if tm_cap_resident >= sublane:
        cap = min(tm_max, tm_cap_resident)
        if Bp >= 2 * sublane:                      # v7x megacore: >= 2 batch tiles
            cap = min(cap, Bp // 2)
        tm = _largest_divisor_tile(Bp, sublane, cap)

        out = pl.pallas_call(
            pod_reduce_resident_kernel,
            out_shape=jax.ShapeDtypeStruct((Bp, Rp), jnp.float32),
            grid_spec=pltpu.PrefetchScalarGridSpec(
                num_scalar_prefetch=0,
                grid=(Bp // tm,),
                in_specs=[
                    pl.BlockSpec((tm, Np), lambda i: (i, 0)),   # X tile (streamed)
                    pl.BlockSpec((Np, Rp), lambda i: (0, 0)),   # proj (resident)
                    pl.BlockSpec((1, Rp), lambda i: (0, 0)),    # bias (resident)
                ],
                out_specs=pl.BlockSpec((tm, Rp), lambda i: (i, 0)),
            ),
            compiler_params=compiler_params_parallel,
            cost_estimate=cost,
        )(Xp, proj, bias)
        return out[:B, :rank]

    # ---- K-tiled fallback (very large Np*Rp) --------------------------------
    # tk: largest multiple of 128 dividing Np, bounded by tk_max and budget.
    tk_budget_cap = max((_VMEM_BUDGET_BYTES // 2) // (2 * Rp * itemsize), 128)
    tk = _largest_divisor_tile(Np, 128, min(tk_max, tk_budget_cap))

    avail = _VMEM_BUDGET_BYTES - 2 * tk * Rp * itemsize - bias_bytes
    denom = 2 * tk * itemsize + 2 * Rp * f32 + Rp * f32   # X + out (x2) + acc
    tm_cap = max(avail // denom, sublane) if avail > 0 else sublane
    cap = min(tm_max, tm_cap)
    if Bp >= 2 * sublane:
        cap = min(cap, Bp // 2)
    tm = _largest_divisor_tile(Bp, sublane, cap)

    out = pl.pallas_call(
        pod_reduce_ktiled_kernel,
        out_shape=jax.ShapeDtypeStruct((Bp, Rp), jnp.float32),
        grid_spec=pltpu.PrefetchScalarGridSpec(
            num_scalar_prefetch=0,
            grid=(Bp // tm, Np // tk),
            in_specs=[
                pl.BlockSpec((tm, tk), lambda i, k: (i, k)),    # X tile
                pl.BlockSpec((tk, Rp), lambda i, k: (k, 0)),    # proj tile
                pl.BlockSpec((1, Rp), lambda i, k: (0, 0)),     # bias (resident)
            ],
            out_specs=pl.BlockSpec((tm, Rp), lambda i, k: (i, 0)),
            scratch_shapes=[pltpu.VMEM((tm, Rp), jnp.float32)],
        ),
        compiler_params=pltpu.CompilerParams(
            dimension_semantics=("parallel", "arbitrary"),
            vmem_limit_bytes=_VMEM_LIMIT_BYTES,
        ),
        cost_estimate=cost,
    )(Xp, proj, bias)
    return out[:B, :rank]


# ----------------------------------------------------------------------------
# Fit (one-time setup, plain JAX — equivalent of PODBlock.fit)
# ----------------------------------------------------------------------------
def fit_pod(X_fit, rank, scale_coefficients=True, input_dtype=jnp.float32):
    """Returns:
      proj  (Np, Rp) in `input_dtype`: pre-transposed, 1/std-folded, zero-padded basis
      bias  (1, Rp) f32:               folded -mean/std, zero-padded
      basis (rank, n_dof), mean (rank,), std (rank,): for reference checks
    """
    X_fit = X_fit.astype(jnp.float32)
    n_dof = X_fit.shape[1]

    # torch: u, s, _ = svd(X.T); basis = u.T
    u, s, _ = jnp.linalg.svd(X_fit.T, full_matrices=False)
    basis = u.T[:rank]                            # (rank, n_dof)

    coeffs = basis @ X_fit.T                      # (rank, n_samples)
    if scale_coefficients:
        mean = jnp.mean(coeffs, axis=1)
        std = jnp.std(coeffs, axis=1, ddof=1)     # torch.std is unbiased
        # NOTE: matches torch semantics; a ~zero-std degenerate mode would give
        # inf/NaN here exactly as the PyTorch module does.
    else:
        mean = jnp.zeros((rank,), jnp.float32)
        std = jnp.ones((rank,), jnp.float32)

    # Fold scaling: (X @ basis.T - mean) / std == X @ (basis/std).T + (-mean/std)
    w = (basis / std[:, None]).T                  # (n_dof, rank)
    b = -mean / std                               # (rank,)

    Np = _round_up(n_dof, 128)
    Rp = _round_up(rank, 128)                     # keep minimal (HBM-bound kernel)
    proj = jnp.zeros((Np, Rp), jnp.float32).at[:n_dof, :rank].set(w)
    bias = jnp.zeros((1, Rp), jnp.float32).at[0, :rank].set(b)

    return proj.astype(input_dtype), bias, basis, mean, std


# TODO(synk): PODBlock.expand (coeff -> field) is the transposed matmul; same
# kernel structure applies but it is not part of forward(), so not implemented.


if __name__ == "__main__":
    key = jax.random.PRNGKey(0)
    k_fit, k_x1, k_x2 = jax.random.split(key, 3)

    # --- aligned case (no padding copy; 2 batch tiles -> megacore path) ------
    n_samples = 32
    n_dof = 256
    rank = 4
    B = 16

    X_fit = jax.random.normal(k_fit, (n_samples, n_dof), dtype=jnp.float32)
    proj, bias, basis, mean, std = fit_pod(X_fit, rank, scale_coefficients=True)

    X = jax.random.normal(k_x1, (B, n_dof), dtype=jnp.float32)
    out = jax.block_until_ready(pod_reduce(X, proj, bias, rank))

    ref = ((basis @ X.T).T - mean) / std
    assert out.shape == (B, rank)
    assert jnp.allclose(out, ref, atol=1e-4, rtol=1e-4), "mismatch (aligned case)"

    # --- unaligned case (exercises batch / n_dof / rank padding) -------------
    n_dof2, rank2, B2 = 200, 3, 11
    X_fit2 = jax.random.normal(k_fit, (n_samples, n_dof2), dtype=jnp.float32)
    proj2, bias2, basis2, mean2, std2 = fit_pod(X_fit2, rank2, scale_coefficients=True)

    X2 = jax.random.normal(k_x2, (B2, n_dof2), dtype=jnp.float32)
    out2 = jax.block_until_ready(pod_reduce(X2, proj2, bias2, rank2))

    ref2 = ((basis2 @ X2.T).T - mean2) / std2
    assert out2.shape == (B2, rank2)
    assert jnp.allclose(out2, ref2, atol=1e-4, rtol=1e-4), "mismatch (padded case)"

    # --- opt-in bf16 streaming path (v5e/v6e bandwidth win), relaxed tol -----
    proj_bf, bias_bf, basis_bf, mean_bf, std_bf = fit_pod(
        X_fit, rank, scale_coefficients=True, input_dtype=jnp.bfloat16
    )
    out_bf = jax.block_until_ready(pod_reduce(X, proj_bf, bias_bf, rank))
    assert out_bf.shape == (B, rank)
    assert jnp.allclose(out_bf, ref, atol=5e-2, rtol=5e-2), "mismatch (bf16 case)"

    print("KERNEL_OK")
</pallas_src>

<mosaic_0001>
module attributes {stable_mosaic.version = 11 : i64} {
  func.func @pod_reduce_resident_kernel(%arg0: i32, %arg1: memref<8x256xf32, #tpu.memory_space<vmem>>, %arg2: memref<256x128xf32, #tpu.memory_space<vmem>>, %arg3: memref<1x128xf32, #tpu.memory_space<vmem>>, %arg4: memref<8x128xf32, #tpu.memory_space<vmem>>) attributes {dimension_semantics = [#tpu.dimension_semantics<parallel>], iteration_bounds = array<i64: 2>, scalar_prefetch = 0 : i64, scratch_operands = 0 : i64, tpu.core_type = #tpu.core_type<tc>, window_params = [{transform_indices = @transform_0, window_bounds = array<i64: 8, 256>}, {pipeline_mode = #tpu.pipeline_mode<synchronous>, transform_indices = @transform_1, window_bounds = array<i64: 256, 128>}, {pipeline_mode = #tpu.pipeline_mode<synchronous>, transform_indices = @transform_2, window_bounds = array<i64: 1, 128>}, {transform_indices = @transform_3, window_bounds = array<i64: 8, 128>}]} {
    %c0 = arith.constant 0 : index
    %c0_0 = arith.constant 0 : index
    %0 = vector.load %arg1[%c0, %c0_0] : memref<8x256xf32, #tpu.memory_space<vmem>>, vector<8x256xf32>
    %c0_1 = arith.constant 0 : index
    %c0_2 = arith.constant 0 : index
    %1 = vector.load %arg2[%c0_1, %c0_2] : memref<256x128xf32, #tpu.memory_space<vmem>>, vector<256x128xf32>
    %cst = arith.constant dense<0.000000e+00> : vector<8x128xf32>
    %2 = tpu.matmul %0, %1, %cst {dimension_numbers = #tpu.dot_dimension_numbers<[1], [0], [0], [1], [0, 0, 1, 1], [], []>} : vector<8x256xf32>, vector<256x128xf32>, vector<8x128xf32> -> vector<8x128xf32>
    %c0_3 = arith.constant 0 : index
    %c0_4 = arith.constant 0 : index
    %3 = vector.load %arg3[%c0_3, %c0_4] : memref<1x128xf32, #tpu.memory_space<vmem>>, vector<1x128xf32>
    %4 = vector.broadcast %3 : vector<1x128xf32> to vector<8x128xf32>
    %5 = arith.addf %2, %4 : vector<8x128xf32>
    %c0_5 = arith.constant 0 : index
    %c0_6 = arith.constant 0 : index
    %6 = vector.load %arg4[%c0_5, %c0_6] : memref<8x128xf32, #tpu.memory_space<vmem>>, vector<8x128xf32>
    tpu.vector_store %arg4[%c0_5, %c0_6], %5 {strides = array<i32>} : memref<8x128xf32, #tpu.memory_space<vmem>>, vector<8x128xf32>,
    return
  }
  func.func @transform_0(%arg0: i32) -> (i32, i32) {
    %c0_i32 = arith.constant 0 : i32
    %c0_i32_0 = arith.constant 0 : i32
    return %arg0, %c0_i32 : i32, i32
  }
  func.func @transform_1(%arg0: i32) -> (i32, i32) {
    %c0_i32 = arith.constant 0 : i32
    %c0_i32_0 = arith.constant 0 : i32
    %c0_i32_1 = arith.constant 0 : i32
    return %c0_i32, %c0_i32_0 : i32, i32
  }
  func.func @transform_2(%arg0: i32) -> (i32, i32) {
    %c0_i32 = arith.constant 0 : i32
    %c0_i32_0 = arith.constant 0 : i32
    %c0_i32_1 = arith.constant 0 : i32
    return %c0_i32, %c0_i32_0 : i32, i32
  }
  func.func @transform_3(%arg0: i32) -> (i32, i32) {
    %c0_i32 = arith.constant 0 : i32
    %c0_i32_0 = arith.constant 0 : i32
    return %arg0, %c0_i32 : i32, i32
  }
}

</mosaic_0001>

<llo_original>
// kernel: tpu_custom_call.1
$region0: #{tpu_custom_call.1}
  #allocation0 [shape = 'u32[]', space=smem, size = 0x4, offset = 0x4, fixed_abs, tag = 'smem constant byte address 0x4 - core index']
  #allocation1 [shape = 'u32[72,128]{1,0:T(1,128)}', space=vmem, size = 0x9000, scoped, tag = 'internal scratch']
  %s0 = inlined_call_operand.hbm [shape: f32[16,256], index: 0, kind: input, shape index: {}]
  %s1 = inlined_call_operand.hbm [shape: f32[256,128], index: 1, kind: input, shape index: {}]
  %s2 = inlined_call_operand.vmem [shape: f32[1,128], index: 2, kind: input, shape index: {}]
  %s3 = inlined_call_operand.hbm [shape: f32[16,128], index: 3, kind: output, shape index: {}]
  %s4 = sld [smem:[#allocation0]]
  $region53: #{tpu_custom_call.1} parent=0
    _
  %s6 = ssub.s32 1, %s4
  %s7 = scalar_select 0, %s6, %s4
  $region1: #{tpu_custom_call.1} parent=0
    #allocation2 [shape = 'u8[16384]{0}', space=vmem, size = 0x4000, scoped, tag = 'input window, operand 0']
    #allocation3 [shape = 's32[2]{0}', space=sflag, size = 0x8, scoped, tag = 'scoped memory for tpu_custom_call.1']
    #allocation4 [shape = 's32[2]{0}', space=sflag, size = 0x8, scoped, tag = 'scoped memory for tpu_custom_call.1']
    #allocation5 [shape = 'u8[131072]{0}', space=vmem, size = 0x20000, scoped, tag = 'input window, operand 1, single buffered']
    #allocation6 [shape = 's32[1]{0}', space=sflag, size = 0x4, scoped, tag = 'scoped memory for tpu_custom_call.1']
    #allocation7 [shape = 'u8[8192]{0}', space=vmem, size = 0x2000, scoped, tag = 'output window, operand 0']
    %8 = vsyncpa [#allocation3], 0
    %s9 = scalar_lea.sflag [#allocation3], 1
    %10 = vsyncpa %s9, 0
    %11 = vsyncpa [#allocation6], 0
    %12 = vsyncpa [#allocation4], 0
    %s13 = scalar_lea.sflag [#allocation4], 1
    %14 = vsyncpa %s13, 0
    loop: start=0, step=1, limit=4
    $region2: #{tpu_custom_call.1} parent=1 // loop_pre_header
      _
    $region3: #{tpu_custom_call.1} parent=1 // loop_header
      %s16 = sphi 0, %s20
      %p17 = scmp.ge.s32.totalorder %s16, 4
      %s26 = sphi 0, %s28
      %s29 = sphi 0, %s26
      %s30 = sphi 0, %s29
      %s46 = sphi 0, %s30
      %s50 = sphi 0, %s50
      %s52 = sphi 0, %s50
      %s53 = sphi 0, %s52
      %s67 = sphi 0, %s53
      %s71 = sphi 0, %s71
      %s73 = sphi 0, %s71
      %s74 = sphi 0, %s73
      %s88 = sphi 0, %s74
      %s94 = sphi 0, %s96
      %s97 = sphi 0, %s94
      %s98 = sphi 0, %s97
      %s114 = sphi 0, %s98
    $region4: #{tpu_custom_call.1} parent=1 // loop_header_branch
      %19 = sbr.rel (%p17) target = $region8
    $region5: #{tpu_custom_call.1} parent=1 // loop_body
      %s21 = ssub.s32 %s16, 1
      %s22 = ssub.s32 %s16, 2
      %s23 = sadd.s32 %s16, 1
      %s24 = ssub.s32 %s16, %s23
      %p25 = scmp.eq.s32.totalorder %s24, 0
      %s27 = sadd.s32 %s26, 1
      %s28 = scalar_select %p25, %s26, %s27
      %p31 = pneg %p25
      %p32 = scmp.eq.s32.totalorder %s16, 1
      %p33 = por %p31, %p32
      %p34 = scmp.ne.s32.totalorder %s26, %s29
      %p35 = scmp.eq.s32.totalorder %s16, 0
      %p36 = por %p34, %p35
      %p37 = scmp.ne.s32.totalorder %s26, %s29
      %p38 = scmp.eq.s32.totalorder %s21, 1
      %p39 = por %p37, %p38
      %p40 = scmp.ne.s32.totalorder %s29, %s30
      %p41 = scmp.eq.s32.totalorder %s21, 0
      %p42 = por %p40, %p41
      %p43 = scmp.ne.s32.totalorder %s29, %s30
      %p44 = scmp.eq.s32.totalorder %s22, 1
      %p45 = por %p43, %p44
      %p47 = scmp.ne.s32.totalorder %s30, %s46
      %p48 = scmp.eq.s32.totalorder %s22, 0
      %p49 = por %p47, %p48
      %s51 = sadd.s32 %s50, 1
      %p54 = scmp.eq.s32.totalorder %s16, 1
      %p55 = scmp.ne.s32.totalorder %s50, %s52
      %p56 = scmp.eq.s32.totalorder %s16, 0
      %p57 = por %p55, %p56
      %p58 = scmp.ne.s32.totalorder %s50, %s52
      %p59 = scmp.eq.s32.totalorder %s21, 1
      %p60 = por %p58, %p59
      %p61 = scmp.ne.s32.totalorder %s52, %s53
      %p62 = scmp.eq.s32.totalorder %s21, 0
      %p63 = por %p61, %p62
      %p64 = scmp.ne.s32.totalorder %s52, %s53
      %p65 = scmp.eq.s32.totalorder %s22, 1
      %p66 = por %p64, %p65
      %p68 = scmp.ne.s32.totalorder %s53, %s67
      %p69 = scmp.eq.s32.totalorder %s22, 0
      %p70 = por %p68, %p69
      %s72 = sadd.s32 %s71, 1
      %p75 = scmp.eq.s32.totalorder %s16, 1
      %p76 = scmp.ne.s32.totalorder %s71, %s73
      %p77 = scmp.eq.s32.totalorder %s16, 0
      %p78 = por %p76, %p77
      %p79 = scmp.ne.s32.totalorder %s71, %s73
      %p80 = scmp.eq.s32.totalorder %s21, 1
      %p81 = por %p79, %p80
      %p82 = scmp.ne.s32.totalorder %s73, %s74
      %p83 = scmp.eq.s32.totalorder %s21, 0
      %p84 = por %p82, %p83
      %p85 = scmp.ne.s32.totalorder %s73, %s74
      %p86 = scmp.eq.s32.totalorder %s22, 1
      %p87 = por %p85, %p86
      %p89 = scmp.ne.s32.totalorder %s74, %s88
      %p90 = scmp.eq.s32.totalorder %s22, 0
      %p91 = por %p89, %p90
      %s92 = ssub.s32 %s16, %s23
      %p93 = scmp.eq.s32.totalorder %s92, 0
      %s95 = sadd.s32 %s94, 1
      %s96 = scalar_select %p93, %s94, %s95
      %p99 = pneg %p93
      %p100 = scmp.eq.s32.totalorder %s16, 1
      %p101 = por %p99, %p100
      %p102 = scmp.ne.s32.totalorder %s94, %s97
      %p103 = scmp.eq.s32.totalorder %s16, 0
      %p104 = por %p102, %p103
      %p105 = scmp.ne.s32.totalorder %s94, %s97
      %p106 = scmp.eq.s32.totalorder %s21, 1
      %p107 = por %p105, %p106
      %p108 = scmp.ne.s32.totalorder %s97, %s98
      %p109 = scmp.eq.s32.totalorder %s21, 0
      %p110 = por %p108, %p109
      %p111 = scmp.ne.s32.totalorder %s97, %s98
      %p112 = scmp.eq.s32.totalorder %s22, 1
      %p113 = por %p111, %p112
      %p115 = scmp.ne.s32.totalorder %s98, %s114
      %p116 = scmp.eq.s32.totalorder %s22, 0
      %p117 = por %p115, %p116
      %p118 = scmp.le.s32.totalorder 1, %s16
      %p119 = scmp.lt.s32.totalorder %s16, 3
      %p120 = pnand %p118, %p119
      %p121 = pneg %p120
      // Predicated region
      $region9: #{tpu_custom_call.1} parent=5 // pred_check
        _
      $region10: #{tpu_custom_call.1} parent=5 // pred_check_branch
        %123 = sbr.rel (%p120) target = $region12
      $region11: #{tpu_custom_call.1} parent=5 // pred_region
        %s124 = ssub.s32 %s16, 1
        // Predicated region
        $region13: #{tpu_custom_call.1} parent=11 // pred_check
          %p125 = pneg %p63
        $region14: #{tpu_custom_call.1} parent=11 // pred_check_branch
          %127 = sbr.rel (%p125) target = $region16
        $region15: #{tpu_custom_call.1} parent=11 // pred_region
          %129 = vsyncadd [#allocation6], 0
          %s130 = sshll.u32 %s1, 4
          %s131 = int_to_ptr.hbm [resolvable:$true] %s130
          %s132 = sshll.u32 [#allocation5], 4
          %s133 = int_to_ptr.vmem [resolvable:$true] %s132
          %138 = dma.hbm_to_vmem [thread:$0]  %s131, 4096, %s133, [#allocation6], 128, 128, 8
        $region16: #{tpu_custom_call.1} parent=11 // pred_fallthru
          _
        // Predicated region
        $region17: #{tpu_custom_call.1} parent=11 // pred_check
          %p139 = pneg %p84
        $region18: #{tpu_custom_call.1} parent=11 // pred_check_branch
          %141 = sbr.rel (%p139) target = $region20
        $region19: #{tpu_custom_call.1} parent=11 // pred_region
          _
        $region20: #{tpu_custom_call.1} parent=11 // pred_fallthru
          _
      $region12: #{tpu_custom_call.1} parent=5 // pred_fallthru
        _
      %p142 = scmp.lt.s32.totalorder %s16, 2
      // Predicated region
      $region21: #{tpu_custom_call.1} parent=5 // pred_check
        %p143 = pneg %p142
      $region22: #{tpu_custom_call.1} parent=5 // pred_check_branch
        %145 = sbr.rel (%p143) target = $region24
      $region23: #{tpu_custom_call.1} parent=5 // pred_region
        // Predicated region
        $region25: #{tpu_custom_call.1} parent=23 // pred_check
          %p146 = pneg %p36
        $region26: #{tpu_custom_call.1} parent=23 // pred_check_branch
          %148 = sbr.rel (%p146) target = $region28
        $region27: #{tpu_custom_call.1} parent=23 // pred_region
          %s149 = sand.u32 %s26, 1
          %s150 = scalar_lea.sflag [#allocation3], %s149
          %s151 = sand.u32 %s26, 1
          %s152 = smul.addr %s151, 16
          %s153 = scalar_lea.vmem [#allocation2], %s152
          %155 = vsyncadd %s150, 0
          %s156 = smul.addr %s16, 2
          %s157 = smul.addr %s156, 8
          %s158 = scalar_lea.hbm %s0, %s157
          %s160 = sshll.u32 %s158, 4
          %s161 = int_to_ptr.hbm [resolvable:$true] %s160
          %s162 = sshll.u32 %s153, 4
          %s163 = int_to_ptr.vmem [resolvable:$true] %s162
          %165 = dma.hbm_to_vmem [thread:$0]  %s161, 256, %s163, %s150
        $region28: #{tpu_custom_call.1} parent=23 // pred_fallthru
          _
      $region24: #{tpu_custom_call.1} parent=5 // pred_fallthru
        _
      %p166 = scmp.le.s32.totalorder 1, %s16
      %p167 = scmp.lt.s32.totalorder %s16, 3
      %p168 = pnand %p166, %p167
      %p169 = pneg %p168
      // Predicated region
      $region29: #{tpu_custom_call.1} parent=5 // pred_check
        _
      $region30: #{tpu_custom_call.1} parent=5 // pred_check_branch
        %171 = sbr.rel (%p168) target = $region32
      $region31: #{tpu_custom_call.1} parent=5 // pred_region
        %s172 = ssub.s32 %s16, 1
        %s173 = sand.u32 %s29, 1
        %s174 = scalar_lea.sflag [#allocation3], %s173
        %s175 = sand.u32 %s29, 1
        %s176 = smul.addr %s175, 16
        %s177 = scalar_lea.vmem [#allocation2], %s176
        // Predicated region
        $region33: #{tpu_custom_call.1} parent=31 // pred_check
          %p178 = pneg %p42
        $region34: #{tpu_custom_call.1} parent=31 // pred_check_branch
          %180 = sbr.rel (%p178) target = $region36
        $region35: #{tpu_custom_call.1} parent=31 // pred_region
          %182 = dma.done %s174, 256
        $region36: #{tpu_custom_call.1} parent=31 // pred_fallthru
          _
        // Predicated region
        $region37: #{tpu_custom_call.1} parent=31 // pred_check
          %p183 = pneg %p63
        $region38: #{tpu_custom_call.1} parent=31 // pred_check_branch
          %185 = sbr.rel (%p183) target = $region40
        $region39: #{tpu_custom_call.1} parent=31 // pred_region
          %187 = dma.done [#allocation6], 4096
        $region40: #{tpu_custom_call.1} parent=31 // pred_fallthru
          _
        %s188 = sand.u32 %s29, 1
        %s189 = scalar_lea.sflag [#allocation3], %s188
        %s190 = sand.u32 %s29, 1
        %s191 = smul.addr %s190, 16
        %s192 = scalar_lea.vmem [#allocation2], %s191
        %p193 = pneg %p42
        %p194 = pneg %p39
        %p195 = pneg %p63
        %p196 = pneg %p60
        %p197 = pneg %p84
        %p198 = pneg %p81
        %p199 = pneg %p110
        %p200 = pneg %p107
        %s201 = sand.u32 %s97, 1
        %s202 = scalar_lea.sflag [#allocation4], %s201
        %s203 = sand.u32 %s97, 1
        %s204 = smul.addr %s203, 8
        %s205 = scalar_lea.vmem [#allocation7], %s204
        %v206 = vld [vmem:[%s177] sm:$0xff]
        %v207 = vld [vmem:[%s177 + $0x8] sm:$0xff]
        %v208 = vld [vmem:[#allocation5] sm:$0xff]
        %v209 = vld [vmem:[#allocation5 + $0x8] sm:$0xff]
        %v210 = vld [vmem:[#allocation5 + $0x10] sm:$0xff]
        %v211 = vld [vmem:[#allocation5 + $0x18] sm:$0xff]
        %v212 = vld [vmem:[#allocation5 + $0x20] sm:$0xff]
        %v213 = vld [vmem:[#allocation5 + $0x28] sm:$0xff]
        %v214 = vld [vmem:[#allocation5 + $0x30] sm:$0xff]
        %v215 = vld [vmem:[#allocation5 + $0x38] sm:$0xff]
        %v216 = vld [vmem:[#allocation5 + $0x40] sm:$0xff]
        %v217 = vld [vmem:[#allocation5 + $0x48] sm:$0xff]
        %v218 = vld [vmem:[#allocation5 + $0x50] sm:$0xff]
        %v219 = vld [vmem:[#allocation5 + $0x58] sm:$0xff]
        %v220 = vld [vmem:[#allocation5 + $0x60] sm:$0xff]
        %v221 = vld [vmem:[#allocation5 + $0x68] sm:$0xff]
        %v222 = vld [vmem:[#allocation5 + $0x70] sm:$0xff]
        %v223 = vld [vmem:[#allocation5 + $0x78] sm:$0xff]
        %v224 = vld [vmem:[#allocation5 + $0x80] sm:$0xff]
        %v225 = vld [vmem:[#allocation5 + $0x88] sm:$0xff]
        %v226 = vld [vmem:[#allocation5 + $0x90] sm:$0xff]
        %v227 = vld [vmem:[#allocation5 + $0x98] sm:$0xff]
        %v228 = vld [vmem:[#allocation5 + $0xa0] sm:$0xff]
        %v229 = vld [vmem:[#allocation5 + $0xa8] sm:$0xff]
        %v230 = vld [vmem:[#allocation5 + $0xb0] sm:$0xff]
        %v231 = vld [vmem:[#allocation5 + $0xb8] sm:$0xff]
        %v232 = vld [vmem:[#allocation5 + $0xc0] sm:$0xff]
        %v233 = vld [vmem:[#allocation5 + $0xc8] sm:$0xff]
        %v234 = vld [vmem:[#allocation5 + $0xd0] sm:$0xff]
        %v235 = vld [vmem:[#allocation5 + $0xd8] sm:$0xff]
        %v236 = vld [vmem:[#allocation5 + $0xe0] sm:$0xff]
        %v237 = vld [vmem:[#allocation5 + $0xe8] sm:$0xff]
        %v238 = vld [vmem:[#allocation5 + $0xf0] sm:$0xff]
        %v239 = vld [vmem:[#allocation5 + $0xf8] sm:$0xff]
        %v240 = vld [vmem:[%s2] sm:$0x1]
        %v242 = vperm.slane %v240, 0
        %244 = vmatpush.msra.mxu0 %v223
        %245 = vmatpush.msra.mxu0 %v222
        %246 = vmatpush.msra.mxu0 %v221
        %247 = vmatpush.msra.mxu0 %v220
        %248 = vmatpush.msra.mxu0 %v219
        %249 = vmatpush.msra.mxu0 %v218
        %250 = vmatpush.msra.mxu0 %v217
        %251 = vmatpush.msra.mxu0 %v216
        %252 = vmatpush.msra.mxu0 %v215
        %253 = vmatpush.msra.mxu0 %v214
        %254 = vmatpush.msra.mxu0 %v213
        %255 = vmatpush.msra.mxu0 %v212
        %256 = vmatpush.msra.mxu0 %v211
        %257 = vmatpush.msra.mxu0 %v210
        %258 = vmatpush.msra.mxu0 %v209
        %259 = vmatpush.msra.mxu0 %v208
        %260 = vmatmul.f32.gmra.mxu0 %v206
        %v261 = vpop.f32.mrf.mxu0
        %v262 = vadd.f32 %v242, %v261
        %263 = vdwg.mxu0
        %264 = vmatpush.msra.mxu0 %v239
        %265 = vmatpush.msra.mxu0 %v238
        %266 = vmatpush.msra.mxu0 %v237
        %267 = vmatpush.msra.mxu0 %v236
        %268 = vmatpush.msra.mxu0 %v235
        %269 = vmatpush.msra.mxu0 %v234
        %270 = vmatpush.msra.mxu0 %v233
        %271 = vmatpush.msra.mxu0 %v232
        %272 = vmatpush.msra.mxu0 %v231
        %273 = vmatpush.msra.mxu0 %v230
        %274 = vmatpush.msra.mxu0 %v229
        %275 = vmatpush.msra.mxu0 %v228
        %276 = vmatpush.msra.mxu0 %v227
        %277 = vmatpush.msra.mxu0 %v226
        %278 = vmatpush.msra.mxu0 %v225
        %279 = vmatpush.msra.mxu0 %v224
        %280 = vmatmul.f32.gmra.mxu0 %v207
        %v281 = vpop.f32.mrf.mxu0
        %v282 = vadd.f32 %v262, %v281
        %283 = vdwg.mxu0
        %284 = vst [vmem:[%s205] sm:$0xff] %v282
        %s285 = sand.u32 %s97, 1
        %s286 = scalar_lea.sflag [#allocation4], %s285
        %s287 = sand.u32 %s97, 1
        %s288 = smul.addr %s287, 8
        %s289 = scalar_lea.vmem [#allocation7], %s288
        // Predicated region
        $region41: #{tpu_custom_call.1} parent=31 // pred_check
          %p290 = pneg %p107
        $region42: #{tpu_custom_call.1} parent=31 // pred_check_branch
          %292 = sbr.rel (%p290) target = $region44
        $region43: #{tpu_custom_call.1} parent=31 // pred_region
          %294 = vsyncadd %s286, 0
          %s295 = smul.addr %s21, 8
          %s296 = scalar_lea.hbm %s3, %s295
          %s298 = sshll.u32 %s289, 4
          %s299 = int_to_ptr.vmem [resolvable:$true] %s298
          %s300 = sshll.u32 %s296, 4
          %s301 = int_to_ptr.hbm [resolvable:$true] %s300
          %303 = dma.vmem_to_hbm [thread:$0]  %s299, 128, %s301, %s286
        $region44: #{tpu_custom_call.1} parent=31 // pred_fallthru
          _
      $region32: #{tpu_custom_call.1} parent=5 // pred_fallthru
        _
      %p304 = scmp.le.s32.totalorder 2, %s16
      // Predicated region
      $region45: #{tpu_custom_call.1} parent=5 // pred_check
        %p305 = pneg %p304
      $region46: #{tpu_custom_call.1} parent=5 // pred_check_branch
        %307 = sbr.rel (%p305) target = $region48
      $region47: #{tpu_custom_call.1} parent=5 // pred_region
        %s308 = ssub.s32 %s16, 2
        // Predicated region
        $region49: #{tpu_custom_call.1} parent=47 // pred_check
          %p309 = pneg %p113
        $region50: #{tpu_custom_call.1} parent=47 // pred_check_branch
          %311 = sbr.rel (%p309) target = $region52
        $region51: #{tpu_custom_call.1} parent=47 // pred_region
          %s312 = sand.u32 %s98, 1
          %s313 = scalar_lea.sflag [#allocation4], %s312
          %s314 = sand.u32 %s98, 1
          %s315 = smul.addr %s314, 8
          %s316 = scalar_lea.vmem [#allocation7], %s315
          %318 = dma.done %s313, 128
        $region52: #{tpu_custom_call.1} parent=47 // pred_fallthru
          _
      $region48: #{tpu_custom_call.1} parent=5 // pred_fallthru
        _
    $region6: #{tpu_custom_call.1} parent=1 // loop_footer
      %s20 = sadd.s32 1, %s16
    $region7: #{tpu_custom_call.1} parent=1 // loop_footer_branch
      %15 = sbr.rel target = $region3
    $region8: #{tpu_custom_call.1} parent=1 // loop_exit
      _
    %319 = vsyncpa [#allocation3], 1
    %s320 = scalar_lea.sflag [#allocation3], 1
    %321 = vsyncpa %s320, 1
    %322 = vsyncpa [#allocation6], 1
    %323 = vsyncpa [#allocation4], 1
    %s324 = scalar_lea.sflag [#allocation4], 1
    %325 = vsyncpa %s324, 1

</llo_original>
